<compile_context>
chip_gen: v5e
topology: v5e:2x2
jax: 0.10.0
libtpu: 0.0.40
codegen_flags: <defaults>
</compile_context>

<pallas_src>
import functools

import jax
import jax.numpy as jnp
from jax.experimental import pallas as pl
from jax.experimental.pallas import tpu as pltpu


def _round_up(x, m):
    return ((x + m - 1) // m) * m


def airl_kernel(
    const_ref,                    # SMEM (1, 1): g_b2 + (gamma - 1) * h_b2
    s_ref,                        # (TB, s_dim)
    a_ref,                        # (TB, a_dim)
    ns_ref,                       # (TB, s_dim)
    gw1s_ref, gw1a_ref, gb1_ref,  # (s_dim, hi), (a_dim, hi), (1, hi)
    gw2_ref,                      # (1, hi)  second-layer weight row (f32)
    hw1_ref, hb1_ref, hw2_ref,    # (s_dim, hi), (1, hi), (1, hi)
    out_ref,                      # (1, 1, TB)  lane-dense (batch on lanes)
    *, gamma,
):
    f32 = jnp.float32
    s = s_ref[...]

    # g path: cat([s, a]) @ g_w1 == s @ g_w1[:s_dim] + a @ g_w1[s_dim:]
    g_hid = (jnp.dot(s, gw1s_ref[...], preferred_element_type=f32)
             + jnp.dot(a_ref[...], gw1a_ref[...], preferred_element_type=f32))
    g_hid = jnp.maximum(g_hid + gb1_ref[...], 0.0)                 # (TB, hi)

    # h path: reuse the already-resident s block; one more matmul for next_s.
    h_s = jnp.maximum(
        jnp.dot(s, hw1_ref[...], preferred_element_type=f32) + hb1_ref[...],
        0.0)
    h_ns = jnp.maximum(
        jnp.dot(ns_ref[...], hw1_ref[...], preferred_element_type=f32)
        + hb1_ref[...], 0.0)

    # hi -> 1 projections off the MXU: VPU multiply by the (1, hi) weight rows
    # and a single fused lane reduce for g + gamma*h(ns) - h(s).
    # (A transposed hi-on-sublanes layout would avoid the lane->sublane
    #  relayout of the reduce, but this kernel is HBM-bound, not XLU-bound.)
    combined = g_hid * gw2_ref[...] + (gamma * h_ns - h_s) * hw2_ref[...]
    res = jnp.sum(combined, axis=-1) + const_ref[0, 0]             # (TB,)

    # Lane-dense store: batch along the 128-lane axis.
    out_ref[...] = res[None, None, :].astype(out_ref.dtype)


def airl_forward(s, a, next_s, params, gamma, *, block_batch=None,
                 use_bf16=True):
    """params: weights pre-transposed to [in, out]; biases are (1, out)."""
    b, s_dim = s.shape
    a_dim = a.shape[1]
    hi = params["g_b1"].shape[-1]

    row_align = 16 if use_bf16 else 8          # bf16 packs 2 rows / sublane
    if block_batch is None:
        block_batch = 8192 if use_bf16 else 4096

    # Batch tile: large enough to amortize the ~0.35 us/step pipeline overhead,
    # capped so (a) the grid has >= 2 steps when the batch allows it (v7x dual
    # TensorCore) and (b) the lane-padded VMEM footprint fits every generation.
    tb = _round_up(min(block_batch, max(b, row_align)), row_align)
    tb = min(tb, _round_up(pl.cdiv(b, 2), row_align))
    # Padded-footprint estimate: 16/8/32-wide features lane-pad to 128, so the
    # real bytes are ~5-8x logical.  Per row: 3 double-buffered input streams
    # + ~4 f32 (TB, hi->128) intermediates + output.
    bytes_per_row = (256 if use_bf16 else 512) * 3 * 2 + 4 * 512 + 64
    vmem_budget = 48 << 20                     # safe on v5e / v6e / v7x(64MiB)
    max_tb = max(row_align,
                 ((vmem_budget - (4 << 20)) // bytes_per_row)
                 // row_align * row_align)
    tb = min(tb, max_tb)

    b_pad = _round_up(b, tb)
    nb = b_pad // tb

    if b_pad != b:
        pad = ((0, b_pad - b), (0, 0))
        s = jnp.pad(s, pad)
        a = jnp.pad(a, pad)
        next_s = jnp.pad(next_s, pad)

    # Pre-split g_w1 so the kernel never needs a materialized [s | a].
    gw1_s = params["g_w1"][:s_dim]                                 # (s_dim, hi)
    gw1_a = params["g_w1"][s_dim:]                                 # (a_dim, hi)
    hw1 = params["h_w1"]                                           # (s_dim, hi)
    gb1 = params["g_b1"].reshape(1, hi).astype(jnp.float32)
    hb1 = params["h_b1"].reshape(1, hi).astype(jnp.float32)
    gw2_row = params["g_w2"].reshape(1, hi).astype(jnp.float32)
    hw2_row = params["h_w2"].reshape(1, hi).astype(jnp.float32)
    # Fold the constant scalar offset  g_b2 + (gamma - 1) * h_b2  -> SMEM.
    const = (params["g_b2"] + (gamma - 1.0) * params["h_b2"])
    const = const.reshape(1, 1).astype(jnp.float32)

    if use_bf16:
        # Halve the dominant HBM streams; accumulate / VPU math stays f32.
        # (Jit the caller so these casts fuse into the producers of s/a/next_s.)
        s = s.astype(jnp.bfloat16)
        a = a.astype(jnp.bfloat16)
        next_s = next_s.astype(jnp.bfloat16)
        gw1_s = gw1_s.astype(jnp.bfloat16)
        gw1_a = gw1_a.astype(jnp.bfloat16)
        hw1 = hw1.astype(jnp.bfloat16)

    kernel = functools.partial(airl_kernel, gamma=float(gamma))

    out = pl.pallas_call(
        kernel,
        grid=(nb,),
        out_shape=jax.ShapeDtypeStruct((nb, 1, tb), jnp.float32),
        in_specs=[
            pl.BlockSpec(memory_space=pltpu.MemorySpace.SMEM),     # const
            pl.BlockSpec((tb, s_dim), lambda i: (i, 0)),           # s
            pl.BlockSpec((tb, a_dim), lambda i: (i, 0)),           # a
            pl.BlockSpec((tb, s_dim), lambda i: (i, 0)),           # next_s
            pl.BlockSpec((s_dim, hi), lambda i: (0, 0)),           # g_w1[:s]
            pl.BlockSpec((a_dim, hi), lambda i: (0, 0)),           # g_w1[s:]
            pl.BlockSpec((1, hi), lambda i: (0, 0)),               # g_b1
            pl.BlockSpec((1, hi), lambda i: (0, 0)),               # g_w2 row
            pl.BlockSpec((s_dim, hi), lambda i: (0, 0)),           # h_w1
            pl.BlockSpec((1, hi), lambda i: (0, 0)),               # h_b1
            pl.BlockSpec((1, hi), lambda i: (0, 0)),               # h_w2 row
        ],
        out_specs=pl.BlockSpec((1, 1, tb), lambda i: (i, 0, 0)),
        compiler_params=pltpu.CompilerParams(
            dimension_semantics=("parallel",),
            vmem_limit_bytes=vmem_budget),
    )(const, s, a, next_s, gw1_s, gw1_a, gb1, gw2_row, hw1, hb1, hw2_row)

    return out.reshape(b_pad, 1)[:b]


def init_params(key, s_dim, a_dim, hi_dim):
    """PyTorch-Linear-style init: U(-1/sqrt(fan_in), 1/sqrt(fan_in))."""
    def linear(key, fan_in, fan_out):
        kw, kb = jax.random.split(key)
        bound = 1.0 / jnp.sqrt(fan_in)
        w = jax.random.uniform(kw, (fan_in, fan_out), jnp.float32, -bound, bound)
        b = jax.random.uniform(kb, (1, fan_out), jnp.float32, -bound, bound)
        return w, b

    k_g1, k_g2, k_h1, k_h2 = jax.random.split(key, 4)
    g_w1, g_b1 = linear(k_g1, s_dim + a_dim, hi_dim)   # [s+a, hi]
    g_w2, g_b2 = linear(k_g2, hi_dim, 1)               # [hi, 1]
    h_w1, h_b1 = linear(k_h1, s_dim, hi_dim)           # [s, hi]
    h_w2, h_b2 = linear(k_h2, hi_dim, 1)               # [hi, 1]
    return {
        "g_w1": g_w1, "g_b1": g_b1, "g_w2": g_w2, "g_b2": g_b2,
        "h_w1": h_w1, "h_b1": h_b1, "h_w2": h_w2, "h_b2": h_b2,
    }


def airl_reference(s, a, next_s, p, gamma):
    """Plain-JAX reference for correctness checking."""
    def g(x):
        hid = jnp.maximum(x @ p["g_w1"] + p["g_b1"], 0.0)
        return hid @ p["g_w2"] + p["g_b2"]

    def h(x):
        hid = jnp.maximum(x @ p["h_w1"] + p["h_b1"], 0.0)
        return hid @ p["h_w2"] + p["h_b2"]

    return g(jnp.concatenate([s, a], -1)) + gamma * h(next_s) - h(s)


if __name__ == "__main__":
    s_dim, a_dim, hi_dim = 16, 8, 32
    batch = 8
    gamma = 0.99

    key = jax.random.PRNGKey(0)
    k_params, k_s, k_a, k_ns = jax.random.split(key, 4)

    params = init_params(k_params, s_dim, a_dim, hi_dim)
    s = jax.random.normal(k_s, (batch, s_dim), jnp.float32)
    a = jax.random.normal(k_a, (batch, a_dim), jnp.float32)
    next_s = jax.random.normal(k_ns, (batch, s_dim), jnp.float32)

    ref = airl_reference(s, a, next_s, params, gamma)

    # f32 path: exact-ish match against the reference.
    fwd_f32 = jax.jit(functools.partial(airl_forward, gamma=gamma,
                                        use_bf16=False))
    out = jax.block_until_ready(fwd_f32(s, a, next_s, params))
    assert out.shape == (batch, 1), out.shape
    assert jnp.allclose(out, ref, atol=1e-5, rtol=1e-5), (out, ref)

    # Default path: bf16 activation/weight streams, f32 accumulation.
    fwd_bf16 = jax.jit(functools.partial(airl_forward, gamma=gamma,
                                         use_bf16=True))
    out_bf16 = jax.block_until_ready(fwd_bf16(s, a, next_s, params))
    assert out_bf16.shape == (batch, 1), out_bf16.shape
    assert float(jnp.max(jnp.abs(out_bf16 - ref))) < 1e-1, (out_bf16, ref)

    print("KERNEL_OK")
</pallas_src>

<mosaic_0001>
module attributes {stable_mosaic.version = 11 : i64} {
  func.func @airl_kernel(%arg0: i32, %arg1: memref<1x1xf32, #tpu.memory_space<smem>>, %arg2: memref<8x16xf32, #tpu.memory_space<vmem>>, %arg3: memref<8x8xf32, #tpu.memory_space<vmem>>, %arg4: memref<8x16xf32, #tpu.memory_space<vmem>>, %arg5: memref<16x32xf32, #tpu.memory_space<vmem>>, %arg6: memref<8x32xf32, #tpu.memory_space<vmem>>, %arg7: memref<1x32xf32, #tpu.memory_space<vmem>>, %arg8: memref<1x32xf32, #tpu.memory_space<vmem>>, %arg9: memref<16x32xf32, #tpu.memory_space<vmem>>, %arg10: memref<1x32xf32, #tpu.memory_space<vmem>>, %arg11: memref<1x32xf32, #tpu.memory_space<vmem>>, %arg12: memref<1x1x8xf32, #tpu.memory_space<vmem>>) attributes {dimension_semantics = [#tpu.dimension_semantics<parallel>], iteration_bounds = array<i64: 1>, scalar_prefetch = 0 : i64, scratch_operands = 0 : i64, tpu.core_type = #tpu.core_type<tc>, window_params = [{transform_indices = @transform_0, window_bounds = array<i64: 1, 1>}, {transform_indices = @transform_1, window_bounds = array<i64: 8, 16>}, {transform_indices = @transform_2, window_bounds = array<i64: 8, 8>}, {transform_indices = @transform_3, window_bounds = array<i64: 8, 16>}, {pipeline_mode = #tpu.pipeline_mode<synchronous>, transform_indices = @transform_4, window_bounds = array<i64: 16, 32>}, {pipeline_mode = #tpu.pipeline_mode<synchronous>, transform_indices = @transform_5, window_bounds = array<i64: 8, 32>}, {pipeline_mode = #tpu.pipeline_mode<synchronous>, transform_indices = @transform_6, window_bounds = array<i64: 1, 32>}, {pipeline_mode = #tpu.pipeline_mode<synchronous>, transform_indices = @transform_7, window_bounds = array<i64: 1, 32>}, {pipeline_mode = #tpu.pipeline_mode<synchronous>, transform_indices = @transform_8, window_bounds = array<i64: 16, 32>}, {pipeline_mode = #tpu.pipeline_mode<synchronous>, transform_indices = @transform_9, window_bounds = array<i64: 1, 32>}, {pipeline_mode = #tpu.pipeline_mode<synchronous>, transform_indices = @transform_10, window_bounds = array<i64: 1, 32>}, {transform_indices = @transform_11, window_bounds = array<i64: 1, 1, 8>}]} {
    %c0 = arith.constant 0 : index
    %c0_0 = arith.constant 0 : index
    %0 = vector.load %arg2[%c0, %c0_0] : memref<8x16xf32, #tpu.memory_space<vmem>>, vector<8x16xf32>
    %c0_1 = arith.constant 0 : index
    %c0_2 = arith.constant 0 : index
    %1 = vector.load %arg5[%c0_1, %c0_2] : memref<16x32xf32, #tpu.memory_space<vmem>>, vector<16x32xf32>
    %cst = arith.constant dense<0.000000e+00> : vector<8x32xf32>
    %2 = tpu.matmul %0, %1, %cst {dimension_numbers = #tpu.dot_dimension_numbers<[1], [0], [0], [1], [0, 0, 1, 1], [], []>} : vector<8x16xf32>, vector<16x32xf32>, vector<8x32xf32> -> vector<8x32xf32>
    %c0_3 = arith.constant 0 : index
    %c0_4 = arith.constant 0 : index
    %3 = vector.load %arg3[%c0_3, %c0_4] : memref<8x8xf32, #tpu.memory_space<vmem>>, vector<8x8xf32>
    %c0_5 = arith.constant 0 : index
    %c0_6 = arith.constant 0 : index
    %4 = vector.load %arg6[%c0_5, %c0_6] : memref<8x32xf32, #tpu.memory_space<vmem>>, vector<8x32xf32>
    %cst_7 = arith.constant dense<0.000000e+00> : vector<8x32xf32>
    %5 = tpu.matmul %3, %4, %cst_7 {dimension_numbers = #tpu.dot_dimension_numbers<[1], [0], [0], [1], [0, 0, 1, 1], [], []>} : vector<8x8xf32>, vector<8x32xf32>, vector<8x32xf32> -> vector<8x32xf32>
    %6 = arith.addf %2, %5 : vector<8x32xf32>
    %c0_8 = arith.constant 0 : index
    %c0_9 = arith.constant 0 : index
    %7 = vector.load %arg7[%c0_8, %c0_9] : memref<1x32xf32, #tpu.memory_space<vmem>>, vector<1x32xf32>
    %8 = vector.broadcast %7 : vector<1x32xf32> to vector<8x32xf32>
    %9 = arith.addf %6, %8 : vector<8x32xf32>
    %cst_10 = arith.constant 0.000000e+00 : f32
    %10 = vector.broadcast %cst_10 : f32 to vector<8x32xf32>
    %11 = arith.maximumf %9, %10 : vector<8x32xf32>
    %c0_11 = arith.constant 0 : index
    %c0_12 = arith.constant 0 : index
    %12 = vector.load %arg9[%c0_11, %c0_12] : memref<16x32xf32, #tpu.memory_space<vmem>>, vector<16x32xf32>
    %cst_13 = arith.constant dense<0.000000e+00> : vector<8x32xf32>
    %13 = tpu.matmul %0, %12, %cst_13 {dimension_numbers = #tpu.dot_dimension_numbers<[1], [0], [0], [1], [0, 0, 1, 1], [], []>} : vector<8x16xf32>, vector<16x32xf32>, vector<8x32xf32> -> vector<8x32xf32>
    %c0_14 = arith.constant 0 : index
    %c0_15 = arith.constant 0 : index
    %14 = vector.load %arg10[%c0_14, %c0_15] : memref<1x32xf32, #tpu.memory_space<vmem>>, vector<1x32xf32>
    %15 = vector.broadcast %14 : vector<1x32xf32> to vector<8x32xf32>
    %16 = arith.addf %13, %15 : vector<8x32xf32>
    %cst_16 = arith.constant 0.000000e+00 : f32
    %17 = vector.broadcast %cst_16 : f32 to vector<8x32xf32>
    %18 = arith.maximumf %16, %17 : vector<8x32xf32>
    %c0_17 = arith.constant 0 : index
    %c0_18 = arith.constant 0 : index
    %19 = vector.load %arg4[%c0_17, %c0_18] : memref<8x16xf32, #tpu.memory_space<vmem>>, vector<8x16xf32>
    %c0_19 = arith.constant 0 : index
    %c0_20 = arith.constant 0 : index
    %20 = vector.load %arg9[%c0_19, %c0_20] : memref<16x32xf32, #tpu.memory_space<vmem>>, vector<16x32xf32>
    %cst_21 = arith.constant dense<0.000000e+00> : vector<8x32xf32>
    %21 = tpu.matmul %19, %20, %cst_21 {dimension_numbers = #tpu.dot_dimension_numbers<[1], [0], [0], [1], [0, 0, 1, 1], [], []>} : vector<8x16xf32>, vector<16x32xf32>, vector<8x32xf32> -> vector<8x32xf32>
    %c0_22 = arith.constant 0 : index
    %c0_23 = arith.constant 0 : index
    %22 = vector.load %arg10[%c0_22, %c0_23] : memref<1x32xf32, #tpu.memory_space<vmem>>, vector<1x32xf32>
    %23 = vector.broadcast %22 : vector<1x32xf32> to vector<8x32xf32>
    %24 = arith.addf %21, %23 : vector<8x32xf32>
    %cst_24 = arith.constant 0.000000e+00 : f32
    %25 = vector.broadcast %cst_24 : f32 to vector<8x32xf32>
    %26 = arith.maximumf %24, %25 : vector<8x32xf32>
    %c0_25 = arith.constant 0 : index
    %c0_26 = arith.constant 0 : index
    %27 = vector.load %arg8[%c0_25, %c0_26] : memref<1x32xf32, #tpu.memory_space<vmem>>, vector<1x32xf32>
    %28 = vector.broadcast %27 : vector<1x32xf32> to vector<8x32xf32>
    %29 = arith.mulf %11, %28 : vector<8x32xf32>
    %cst_27 = arith.constant 9.900000e-01 : f32
    %30 = vector.broadcast %cst_27 : f32 to vector<8x32xf32>
    %31 = arith.mulf %30, %26 : vector<8x32xf32>
    %32 = arith.subf %31, %18 : vector<8x32xf32>
    %c0_28 = arith.constant 0 : index
    %c0_29 = arith.constant 0 : index
    %33 = vector.load %arg11[%c0_28, %c0_29] : memref<1x32xf32, #tpu.memory_space<vmem>>, vector<1x32xf32>
    %34 = vector.broadcast %33 : vector<1x32xf32> to vector<8x32xf32>
    %35 = arith.mulf %32, %34 : vector<8x32xf32>
    %36 = arith.addf %29, %35 : vector<8x32xf32>
    %cst_30 = arith.constant dense<0.000000e+00> : vector<8xf32>
    %37 = vector.multi_reduction <add>, %36, %cst_30 [1] : vector<8x32xf32> to vector<8xf32>
    %c0_31 = arith.constant 0 : index
    %c0_32 = arith.constant 0 : index
    %38 = memref.load %arg1[%c0_31, %c0_32] : memref<1x1xf32, #tpu.memory_space<smem>>
    %39 = vector.broadcast %38 : f32 to vector<8xf32>
    %40 = arith.addf %37, %39 : vector<8xf32>
    %41 = vector.shape_cast %40 : vector<8xf32> to vector<1x1x8xf32>
    %c0_33 = arith.constant 0 : index
    %c0_34 = arith.constant 0 : index
    %c0_35 = arith.constant 0 : index
    %42 = vector.load %arg12[%c0_33, %c0_34, %c0_35] : memref<1x1x8xf32, #tpu.memory_space<vmem>>, vector<1x1x8xf32>
    tpu.vector_store %arg12[%c0_33, %c0_34, %c0_35], %41 {strides = array<i32>} : memref<1x1x8xf32, #tpu.memory_space<vmem>>, vector<1x1x8xf32>,
    return
  }
  func.func @transform_0(%arg0: i32) -> (i32, i32) {
    %c0_i32 = arith.constant 0 : i32
    %c0_i32_0 = arith.constant 0 : i32
    %c0_i32_1 = arith.constant 0 : i32
    return %c0_i32, %c0_i32_0 : i32, i32
  }
  func.func @transform_1(%arg0: i32) -> (i32, i32) {
    %c0_i32 = arith.constant 0 : i32
    %c0_i32_0 = arith.constant 0 : i32
    return %arg0, %c0_i32 : i32, i32
  }
  func.func @transform_2(%arg0: i32) -> (i32, i32) {
    %c0_i32 = arith.constant 0 : i32
    %c0_i32_0 = arith.constant 0 : i32
    return %arg0, %c0_i32 : i32, i32
  }
  func.func @transform_3(%arg0: i32) -> (i32, i32) {
    %c0_i32 = arith.constant 0 : i32
    %c0_i32_0 = arith.constant 0 : i32
    return %arg0, %c0_i32 : i32, i32
  }
  func.func @transform_4(%arg0: i32) -> (i32, i32) {
    %c0_i32 = arith.constant 0 : i32
    %c0_i32_0 = arith.constant 0 : i32
    %c0_i32_1 = arith.constant 0 : i32
    return %c0_i32, %c0_i32_0 : i32, i32
  }
  func.func @transform_5(%arg0: i32) -> (i32, i32) {
    %c0_i32 = arith.constant 0 : i32
    %c0_i32_0 = arith.constant 0 : i32
    %c0_i32_1 = arith.constant 0 : i32
    return %c0_i32, %c0_i32_0 : i32, i32
  }
  func.func @transform_6(%arg0: i32) -> (i32, i32) {
    %c0_i32 = arith.constant 0 : i32
    %c0_i32_0 = arith.constant 0 : i32
    %c0_i32_1 = arith.constant 0 : i32
    return %c0_i32, %c0_i32_0 : i32, i32
  }
  func.func @transform_7(%arg0: i32) -> (i32, i32) {
    %c0_i32 = arith.constant 0 : i32
    %c0_i32_0 = arith.constant 0 : i32
    %c0_i32_1 = arith.constant 0 : i32
    return %c0_i32, %c0_i32_0 : i32, i32
  }
  func.func @transform_8(%arg0: i32) -> (i32, i32) {
    %c0_i32 = arith.constant 0 : i32
    %c0_i32_0 = arith.constant 0 : i32
    %c0_i32_1 = arith.constant 0 : i32
    return %c0_i32, %c0_i32_0 : i32, i32
  }
  func.func @transform_9(%arg0: i32) -> (i32, i32) {
    %c0_i32 = arith.constant 0 : i32
    %c0_i32_0 = arith.constant 0 : i32
    %c0_i32_1 = arith.constant 0 : i32
    return %c0_i32, %c0_i32_0 : i32, i32
  }
  func.func @transform_10(%arg0: i32) -> (i32, i32) {
    %c0_i32 = arith.constant 0 : i32
    %c0_i32_0 = arith.constant 0 : i32
    %c0_i32_1 = arith.constant 0 : i32
    return %c0_i32, %c0_i32_0 : i32, i32
  }
  func.func @transform_11(%arg0: i32) -> (i32, i32, i32) {
    %c0_i32 = arith.constant 0 : i32
    %c0_i32_0 = arith.constant 0 : i32
    %c0_i32_1 = arith.constant 0 : i32
    return %arg0, %c0_i32, %c0_i32_0 : i32, i32, i32
  }
}

</mosaic_0001>

<llo_original>
// kernel: airl_forward.1
$region0: #{airl_forward.1}
  #allocation0 [shape = 'u32[]', space=smem, size = 0x4, offset = 0x4, fixed_abs, tag = 'smem constant byte address 0x4 - core index']
  #allocation1 [shape = 'u32[72,128]{1,0:T(1,128)}', space=vmem, size = 0x9000, scoped, tag = 'internal scratch']
  #allocation2 [shape = 'f32[1,1]{1,0:T(1,128)S(6)}', space=smem, size = 0x200, scoped, tag = 'scoped memory for airl_forward.1']
  %s0 = inlined_call_operand.<no memory space> [shape: f32[1,1], index: 0, kind: input, shape index: {}]
  %s1 = inlined_call_operand.vmem [shape: f32[8,16], index: 1, kind: input, shape index: {}]
  %s2 = inlined_call_operand.vmem [shape: f32[8,8], index: 2, kind: input, shape index: {}]
  %s3 = inlined_call_operand.hbm [shape: f32[8,16], index: 3, kind: input, shape index: {}]
  %s4 = inlined_call_operand.vmem [shape: f32[16,32], index: 4, kind: input, shape index: {}]
  %s5 = inlined_call_operand.vmem [shape: f32[8,32], index: 5, kind: input, shape index: {}]
  %s6 = inlined_call_operand.vmem [shape: f32[1,32], index: 6, kind: input, shape index: {}]
  %s7 = inlined_call_operand.vmem [shape: f32[1,32], index: 7, kind: input, shape index: {}]
  %s8 = inlined_call_operand.vmem [shape: f32[16,32], index: 8, kind: input, shape index: {}]
  %s9 = inlined_call_operand.vmem [shape: f32[1,32], index: 9, kind: input, shape index: {}]
  %s10 = inlined_call_operand.vmem [shape: f32[1,32], index: 10, kind: input, shape index: {}]
  %s11 = inlined_call_operand.hbm [shape: f32[1,1,8], index: 11, kind: output, shape index: {}]
  %s12 = sld [smem:[#allocation0]]
  $region58: #{airl_forward.1} parent=0
    _
  %s14 = ssub.s32 1, %s12
  %s15 = scalar_select 0, %s14, %s12
  %16 = sst [smem:[#allocation2]] %s0
  $region1: #{airl_forward.1} parent=0
    #allocation3 [shape = 'u8[4096]{0}', space=vmem, size = 0x1000, scoped, tag = 'input window, operand 3, single buffered']
    #allocation4 [shape = 's32[1]{0}', space=sflag, size = 0x4, scoped, tag = 'scoped memory for airl_forward.1']
    #allocation5 [shape = 's32[1]{0}', space=sflag, size = 0x4, scoped, tag = 'scoped memory for airl_forward.1']
    #allocation6 [shape = 'u8[512]{0}', space=vmem, size = 0x400, scoped, tag = 'output window, operand 0, single buffered']
    %17 = vsyncpa [#allocation4], 0
    %18 = vsyncpa [#allocation5], 0
    // Predicated region
    $region2: #{airl_forward.1} parent=1 // pred_check
      _
    $region3: #{airl_forward.1} parent=1 // pred_check_branch
      %20 = sbr.rel (0) target = $region5
    $region4: #{airl_forward.1} parent=1 // pred_region
      _
    $region5: #{airl_forward.1} parent=1 // pred_fallthru
      _
    // Predicated region
    $region6: #{airl_forward.1} parent=1 // pred_check
      _
    $region7: #{airl_forward.1} parent=1 // pred_check_branch
      %22 = sbr.rel (0) target = $region9
    $region8: #{airl_forward.1} parent=1 // pred_region
      _
    $region9: #{airl_forward.1} parent=1 // pred_fallthru
      _
    // Predicated region
    $region10: #{airl_forward.1} parent=1 // pred_check
      _
    $region11: #{airl_forward.1} parent=1 // pred_check_branch
      %24 = sbr.rel (0) target = $region13
    $region12: #{airl_forward.1} parent=1 // pred_region
      _
    $region13: #{airl_forward.1} parent=1 // pred_fallthru
      _
    // Predicated region
    $region14: #{airl_forward.1} parent=1 // pred_check
      _
    $region15: #{airl_forward.1} parent=1 // pred_check_branch
      %26 = sbr.rel (0) target = $region17
    $region16: #{airl_forward.1} parent=1 // pred_region
      %28 = vsyncadd [#allocation4], 0
      %s30 = sshll.u32 %s3, 4
      %s31 = int_to_ptr.hbm [resolvable:$true] %s30
      %s32 = sshll.u32 [#allocation3], 4
      %s33 = int_to_ptr.vmem [resolvable:$true] %s32
      %35 = dma.hbm_to_vmem [thread:$0]  %s31, 128, %s33, [#allocation4]
    $region17: #{airl_forward.1} parent=1 // pred_fallthru
      _
    // Predicated region
    $region18: #{airl_forward.1} parent=1 // pred_check
      _
    $region19: #{airl_forward.1} parent=1 // pred_check_branch
      %37 = sbr.rel (0) target = $region21
    $region20: #{airl_forward.1} parent=1 // pred_region
      _
    $region21: #{airl_forward.1} parent=1 // pred_fallthru
      _
    // Predicated region
    $region22: #{airl_forward.1} parent=1 // pred_check
      _
    $region23: #{airl_forward.1} parent=1 // pred_check_branch
      %39 = sbr.rel (0) target = $region25
    $region24: #{airl_forward.1} parent=1 // pred_region
      _
    $region25: #{airl_forward.1} parent=1 // pred_fallthru
      _
    // Predicated region
    $region26: #{airl_forward.1} parent=1 // pred_check
      _
    $region27: #{airl_forward.1} parent=1 // pred_check_branch
      %41 = sbr.rel (0) target = $region29
    $region28: #{airl_forward.1} parent=1 // pred_region
      _
    $region29: #{airl_forward.1} parent=1 // pred_fallthru
      _
    // Predicated region
    $region30: #{airl_forward.1} parent=1 // pred_check
      _
    $region31: #{airl_forward.1} parent=1 // pred_check_branch
      %43 = sbr.rel (0) target = $region33
    $region32: #{airl_forward.1} parent=1 // pred_region
      _
    $region33: #{airl_forward.1} parent=1 // pred_fallthru
      _
    // Predicated region
    $region34: #{airl_forward.1} parent=1 // pred_check
      _
    $region35: #{airl_forward.1} parent=1 // pred_check_branch
      %45 = sbr.rel (0) target = $region37
    $region36: #{airl_forward.1} parent=1 // pred_region
      _
    $region37: #{airl_forward.1} parent=1 // pred_fallthru
      _
    // Predicated region
    $region38: #{airl_forward.1} parent=1 // pred_check
      _
    $region39: #{airl_forward.1} parent=1 // pred_check_branch
      %47 = sbr.rel (0) target = $region41
    $region40: #{airl_forward.1} parent=1 // pred_region
      _
    $region41: #{airl_forward.1} parent=1 // pred_fallthru
      _
    // Predicated region
    $region42: #{airl_forward.1} parent=1 // pred_check
      _
    $region43: #{airl_forward.1} parent=1 // pred_check_branch
      %49 = sbr.rel (0) target = $region45
    $region44: #{airl_forward.1} parent=1 // pred_region
      _
    $region45: #{airl_forward.1} parent=1 // pred_fallthru
      _
    // Predicated region
    $region46: #{airl_forward.1} parent=1 // pred_check
      _
    $region47: #{airl_forward.1} parent=1 // pred_check_branch
      %51 = sbr.rel (0) target = $region49
    $region48: #{airl_forward.1} parent=1 // pred_region
      %53 = dma.done [#allocation4], 128
    $region49: #{airl_forward.1} parent=1 // pred_fallthru
      _
    %v54 = vld [vmem:[%s1] sm:$0xff]
    %v55 = vld [vmem:[%s4] sm:$0xff]
    %v56 = vld [vmem:[%s4 + $0x8] sm:$0xff]
    %v57 = vld [vmem:[%s2] sm:$0xff]
    %v58 = vld [vmem:[%s5] sm:$0xff]
    %vm59 = vcmask 64512
    %v61 = vsel %vm59, %v57, 0
    %63 = vmatpush.msra.mxu0 0.0
    %64 = vmatpush.msra.mxu0 0.0
    %65 = vmatpush.msra.mxu0 0.0
    %66 = vmatpush.msra.mxu0 0.0
    %67 = vmatpush.msra.mxu0 0.0
    %68 = vmatpush.msra.mxu0 0.0
    %69 = vmatpush.msra.mxu0 0.0
    %70 = vmatpush.msra.mxu0 0.0
    %71 = vmatpush.msra.mxu0 0.0
    %72 = vmatpush.msra.mxu0 0.0
    %73 = vmatpush.msra.mxu0 0.0
    %74 = vmatpush.msra.mxu0 0.0
    %75 = vmatpush.msra.mxu0 0.0
    %76 = vmatpush.msra.mxu0 0.0
    %77 = vmatpush.msra.mxu0 0.0
    %78 = vmatpush.msra.mxu0 %v58
    %79 = vmatmul.f32.gmra.mxu0 %v61
    %v80 = vpop.f32.mrf.mxu0
    %v81 = vadd.f32 0.0, %v80
    %82 = vdwg.mxu0
    %vm83 = vcmask 130048
    %v85 = vsel %vm83, %v54, 0
    %87 = vmatpush.msra.mxu0 0.0
    %88 = vmatpush.msra.mxu0 0.0
    %89 = vmatpush.msra.mxu0 0.0
    %90 = vmatpush.msra.mxu0 0.0
    %91 = vmatpush.msra.mxu0 0.0
    %92 = vmatpush.msra.mxu0 0.0
    %93 = vmatpush.msra.mxu0 0.0
    %94 = vmatpush.msra.mxu0 0.0
    %95 = vmatpush.msra.mxu0 0.0
    %96 = vmatpush.msra.mxu0 0.0
    %97 = vmatpush.msra.mxu0 0.0
    %98 = vmatpush.msra.mxu0 0.0
    %99 = vmatpush.msra.mxu0 0.0
    %100 = vmatpush.msra.mxu0 0.0
    %101 = vmatpush.msra.mxu0 %v56
    %102 = vmatpush.msra.mxu0 %v55
    %103 = vmatmul.f32.gmra.mxu0 %v85
    %v104 = vpop.f32.mrf.mxu0
    %v105 = vadd.f32 %v81, %v104
    %106 = vdwg.mxu0
    %v107 = vld [vmem:[%s6] sm:$0x1]
    %v109 = vperm.slane %v107, 0
    %v111 = vadd.f32 %v105, %v109
    %v112 = vmax.f32 %v111, 0.0
    %v113 = vld [vmem:[%s8] sm:$0xff]
    %v114 = vld [vmem:[%s8 + $0x8] sm:$0xff]
    %v115 = vld [vmem:[%s9] sm:$0x1]
    %v117 = vperm.slane %v115, 0
    %119 = vmatpush.msra.mxu0 0.0
    %120 = vmatpush.msra.mxu0 0.0
    %121 = vmatpush.msra.mxu0 0.0
    %122 = vmatpush.msra.mxu0 0.0
    %123 = vmatpush.msra.mxu0 0.0
    %124 = vmatpush.msra.mxu0 0.0
    %125 = vmatpush.msra.mxu0 0.0
    %126 = vmatpush.msra.mxu0 0.0
    %127 = vmatpush.msra.mxu0 0.0
    %128 = vmatpush.msra.mxu0 0.0
    %129 = vmatpush.msra.mxu0 0.0
    %130 = vmatpush.msra.mxu0 0.0
    %131 = vmatpush.msra.mxu0 0.0
    %132 = vmatpush.msra.mxu0 0.0
    %133 = vmatpush.msra.mxu0 %v114
    %134 = vmatpush.msra.mxu0 %v113
    %135 = vmatmul.f32.gmra.mxu0 %v85
    %v136 = vpop.f32.mrf.mxu0
    %v137 = vadd.f32 %v117, %v136
    %138 = vdwg.mxu0
    %v139 = vmax.f32 %v137, 0.0
    %v140 = vld [vmem:[#allocation3] sm:$0xff]
    %v142 = vsel %vm83, %v140, 0
    %144 = vmatpush.msra.mxu0 0.0
    %145 = vmatpush.msra.mxu0 0.0
    %146 = vmatpush.msra.mxu0 0.0
    %147 = vmatpush.msra.mxu0 0.0
    %148 = vmatpush.msra.mxu0 0.0
    %149 = vmatpush.msra.mxu0 0.0
    %150 = vmatpush.msra.mxu0 0.0
    %151 = vmatpush.msra.mxu0 0.0
    %152 = vmatpush.msra.mxu0 0.0
    %153 = vmatpush.msra.mxu0 0.0
    %154 = vmatpush.msra.mxu0 0.0
    %155 = vmatpush.msra.mxu0 0.0
    %156 = vmatpush.msra.mxu0 0.0
    %157 = vmatpush.msra.mxu0 0.0
    %158 = vmatpush.msra.mxu0 %v114
    %159 = vmatpush.msra.mxu0 %v113
    %160 = vmatmul.f32.gmra.mxu0 %v142
    %v161 = vpop.f32.mrf.mxu0
    %v162 = vadd.f32 %v117, %v161
    %163 = vdwg.mxu0
    %v164 = vmax.f32 %v162, 0.0
    %v165 = vld [vmem:[%s7] sm:$0x1]
    %v167 = vperm.slane %v165, 0
    %v169 = vmul.f32 %v112, %v167
    %v170 = vmul.f32 %v164, 0.99
    %v171 = vsub.f32 %v170, %v139
    %v172 = vld [vmem:[%s10] sm:$0x1]
    %v174 = vperm.slane %v172, 0
    %v176 = vmul.f32 %v171, %v174
    %v177 = vadd.f32 %v169, %v176
    %vm178 = vcmask 261120
    %v179 = vsel %vm178, %v177, 0.0
    %180 = vadd.xlane.f32.xlu0 %v179
    %v181 = vpop.xlane.xlu0 %180
    %s182 = sld [smem:[#allocation2]]
    %v183 = vstv %s182
    %v184 = vadd.f32 %v181, %v183
    %v186 = vlaneseq
    %v187 = vand.u32 %v186, 127
    %v188 = vperm.slane %v184, %v187
    %vm190 = vcmask 57344
    %191 = vst.msk [vmem:[#allocation6] sm:$0x1] %vm190, %v188
    // Predicated region
    $region50: #{airl_forward.1} parent=1 // pred_check
      _
    $region51: #{airl_forward.1} parent=1 // pred_check_branch
      %193 = sbr.rel (0) target = $region53
    $region52: #{airl_forward.1} parent=1 // pred_region
      %195 = vsyncadd [#allocation5], 0
      %s197 = sshll.u32 [#allocation6], 4
      %s198 = int_to_ptr.vmem [resolvable:$true] %s197
      %s199 = sshll.u32 %s11, 4
      %s200 = int_to_ptr.hbm [resolvable:$true] %s199
      %202 = dma.vmem_to_hbm [thread:$0]  %s198, 16, %s200, [#allocation5]
    $region53: #{airl_forward.1} parent=1 // pred_fallthru
      _
    // Predicated region
    $region54: #{airl_forward.1} parent=1 // pred_check
      _
    $region55: #{airl_forward.1} parent=1 // pred_check_branch
      %204 = sbr.rel (0) target = $region57
    $region56: #{airl_forward.1} parent=1 // pred_region
      %206 = dma.done [#allocation5], 16
    $region57: #{airl_forward.1} parent=1 // pred_fallthru
      _
    %207 = vsyncpa [#allocation4], 1
    %208 = vsyncpa [#allocation5], 1

</llo_original>
